<compile_context>
chip_gen: v5e
topology: v5e:2x2
jax: 0.10.0
libtpu: 0.0.40
codegen_flags: <defaults>
</compile_context>

<pallas_src>
import jax
import jax.numpy as jnp
from jax.experimental import pallas as pl
from jax.experimental.pallas import tpu as pltpu


def _round_up(n, m):
    return ((n + m - 1) // m) * m


def _make_mlp_adapter_kernel(alpha, matmul_dtype):
    one_minus_alpha = 1.0 - alpha

    def kernel(x_ref, w1_ref, w2_ref, y_ref):
        # MXU path: narrow (bf16) operands, f32 accumulation.  Zero padding of
        # D/H is exact: the linears have no bias and ReLU(0) == 0, so padded
        # rows/cols never contribute to unpadded outputs.
        xm = x_ref[...].astype(matmul_dtype)
        h = jnp.dot(xm, w1_ref[...], preferred_element_type=jnp.float32)
        h = jnp.maximum(h, 0.0)
        m = jnp.dot(h.astype(matmul_dtype), w2_ref[...],
                    preferred_element_type=jnp.float32)
        m = jnp.maximum(m, 0.0)
        # Residual epilogue in f32; re-read the VMEM-resident x tile rather
        # than keeping an f32 copy live across both MXU passes.
        xr = x_ref[...].astype(jnp.float32)
        y_ref[...] = (alpha * m + one_minus_alpha * xr).astype(y_ref.dtype)

    return kernel


def _vmem_budget_bytes():
    """Per-generation VMEM budget for streamed tiles + resident weights."""
    try:
        cap = getattr(pltpu.get_tpu_info(), "vmem_capacity_bytes", None)
        if cap:
            # v5e/v6e (128 MiB physical) -> 24 MiB, v7x (64 MiB) -> 16 MiB.
            return int(min(cap // 4, 24 * 1024 * 1024))
    except Exception:
        pass
    return 12 * 1024 * 1024  # safe everywhere (v5e scoped default is 16 MiB)


def mlp_adapter_forward(x, w1, w2, alpha, *, max_block_rows=1024,
                        matmul_dtype=jnp.bfloat16, out_dtype=None):
    """y = alpha * ReLU(ReLU(x @ w1) @ w2) + (1 - alpha) * x  (Pallas TPU)."""
    B, D = x.shape
    D_in, H = w1.shape
    assert D_in == D and w2.shape == (H, D)
    alpha = float(alpha)
    out_dtype = jnp.dtype(x.dtype if out_dtype is None else out_dtype)

    # Lane-dense / MXU-friendly padding of the feature dims.
    Dp = _round_up(D, 128)
    Hp = _round_up(H, 128)

    w_item = jnp.dtype(matmul_dtype).itemsize
    out_item = out_dtype.itemsize
    # Weights are VMEM-resident (constant index maps) but the pipeline still
    # allocates 2 buffers for them, so count them twice.
    # TODO(synk): pipeline_mode=pl.Buffered(1) on the weight specs would halve
    # this; kept at the default double-buffering for lowering portability and
    # accounted for in the budget instead.
    w_bytes = 2 * (Dp * Hp + Hp * Dp) * w_item

    def footprint(tb):
        x_bytes = 2 * tb * Dp * 4            # double-buffered x stream (f32 worst case)
        y_bytes = 2 * tb * Dp * out_item     # double-buffered y stream
        h_bytes = tb * Hp * 4                # f32 hidden intermediate
        epi_bytes = tb * Dp * 4              # f32 epilogue temporary
        return w_bytes + x_bytes + y_bytes + h_bytes + epi_bytes

    budget = _vmem_budget_bytes()

    # Batch tile: multiple of 8 sublanes; at least 2 grid steps when B allows
    # (so v7x's two TensorCores both run and DMA overlaps compute); shrink
    # until the footprint fits the per-generation VMEM budget.
    min_steps = 2 if B >= 16 else 1
    TB = max(8, min(max_block_rows, _round_up(pl.cdiv(B, min_steps), 8)))
    while TB > 8 and footprint(TB) > budget:
        TB = max(8, _round_up(TB // 2, 8))
    Bp = _round_up(B, TB)

    # Weights: pad + cast once (cache these across calls in a real model —
    # they are static parameters).
    if (D, H) == (Dp, Hp) and w1.dtype == matmul_dtype and w2.dtype == matmul_dtype:
        w1_p, w2_p = w1, w2
    else:
        w1_p = jnp.zeros((Dp, Hp), matmul_dtype).at[:D, :H].set(
            w1.astype(matmul_dtype))
        w2_p = jnp.zeros((Hp, Dp), matmul_dtype).at[:H, :D].set(
            w2.astype(matmul_dtype))

    # x: stream directly (no extra HBM pad/copy pass) when already lane-dense
    # and tile-divisible; otherwise stage the padded copy in the narrow matmul
    # dtype so the padded stream is half-width.
    needs_stage = (Dp != D) or (Bp != B)
    if needs_stage:
        x_in = jnp.zeros((Bp, Dp), matmul_dtype).at[:B, :D].set(
            x.astype(matmul_dtype))
    else:
        x_in = x

    kernel = _make_mlp_adapter_kernel(alpha, matmul_dtype)
    vmem_limit = int(min(max(footprint(TB) + (4 << 20), 16 << 20), 64 << 20))

    y_pad = pl.pallas_call(
        kernel,
        out_shape=jax.ShapeDtypeStruct((Bp, Dp), out_dtype),
        grid=(Bp // TB,),
        in_specs=[
            pl.BlockSpec((TB, Dp), lambda i: (i, 0)),    # x row tile (streamed)
            pl.BlockSpec((Dp, Hp), lambda i: (0, 0)),    # W1 (VMEM-resident)
            pl.BlockSpec((Hp, Dp), lambda i: (0, 0)),    # W2 (VMEM-resident)
        ],
        out_specs=pl.BlockSpec((TB, Dp), lambda i: (i, 0)),
        compiler_params=pltpu.CompilerParams(
            dimension_semantics=("parallel",),
            vmem_limit_bytes=vmem_limit),
    )(x_in, w1_p, w2_p)

    if (Bp, Dp) != (B, D):
        y_pad = y_pad[:B, :D]
    return y_pad


def ref_forward(x, w1, w2, alpha):
    """Pure-JAX reference of the PyTorch MLPAdapter.forward semantics."""
    m = jnp.maximum(jnp.maximum(x @ w1, 0.0) @ w2, 0.0)
    return alpha * m + (1.0 - alpha) * x


if __name__ == "__main__":
    # Small shapes consistent with the module.
    B = 2                   # batch of CLIP-encoded features
    EMBED_DIM = 32          # CLIP embedding dim
    ADAPTER_HIDDEN = 16     # adapter hidden channels
    ALPHA = 0.7             # init_alpha default

    key = jax.random.PRNGKey(0)
    k_x, k_w1, k_w2 = jax.random.split(key, 3)

    # embedded_tensor: output of the CLIP encoder, [B, embed_dim].
    x = jax.random.normal(k_x, (B, EMBED_DIM), dtype=jnp.float32)
    # Linear weights stored as (in, out); equivalent to PyTorch's x @ W.T.
    w1 = jax.random.normal(k_w1, (EMBED_DIM, ADAPTER_HIDDEN),
                           dtype=jnp.float32) * 0.1
    w2 = jax.random.normal(k_w2, (ADAPTER_HIDDEN, EMBED_DIM),
                           dtype=jnp.float32) * 0.1

    # Pallas kernel.
    y = mlp_adapter_forward(x, w1, w2, ALPHA)
    jax.block_until_ready(y)

    # Correctness check against the pure-JAX f32 reference.  bf16 MXU operands
    # (f32 accumulation) and a bf16-staged residual on the padded demo path ->
    # loosen tolerance vs pure f32.
    y_ref = ref_forward(x, w1, w2, ALPHA)
    assert jnp.allclose(y, y_ref, atol=2e-2, rtol=2e-2), (
        float(jnp.max(jnp.abs(y - y_ref))))

    print("KERNEL_OK")
</pallas_src>

<mosaic_0001>
module attributes {stable_mosaic.version = 11 : i64} {
  func.func @kernel(%arg0: i32, %arg1: memref<8x128xbf16, #tpu.memory_space<vmem>>, %arg2: memref<128x128xbf16, #tpu.memory_space<vmem>>, %arg3: memref<128x128xbf16, #tpu.memory_space<vmem>>, %arg4: memref<8x128xf32, #tpu.memory_space<vmem>>) attributes {dimension_semantics = [#tpu.dimension_semantics<parallel>], iteration_bounds = array<i64: 1>, scalar_prefetch = 0 : i64, scratch_operands = 0 : i64, tpu.core_type = #tpu.core_type<tc>, window_params = [{transform_indices = @transform_0, window_bounds = array<i64: 8, 128>}, {pipeline_mode = #tpu.pipeline_mode<synchronous>, transform_indices = @transform_1, window_bounds = array<i64: 128, 128>}, {pipeline_mode = #tpu.pipeline_mode<synchronous>, transform_indices = @transform_2, window_bounds = array<i64: 128, 128>}, {transform_indices = @transform_3, window_bounds = array<i64: 8, 128>}]} {
    %c0 = arith.constant 0 : index
    %c0_0 = arith.constant 0 : index
    %0 = vector.load %arg1[%c0, %c0_0] : memref<8x128xbf16, #tpu.memory_space<vmem>>, vector<8x128xbf16>
    %c0_1 = arith.constant 0 : index
    %c0_2 = arith.constant 0 : index
    %1 = vector.load %arg2[%c0_1, %c0_2] : memref<128x128xbf16, #tpu.memory_space<vmem>>, vector<128x128xbf16>
    %cst = arith.constant dense<0.000000e+00> : vector<8x128xf32>
    %2 = tpu.matmul %0, %1, %cst {dimension_numbers = #tpu.dot_dimension_numbers<[1], [0], [0], [1], [0, 0, 1, 1], [], []>} : vector<8x128xbf16>, vector<128x128xbf16>, vector<8x128xf32> -> vector<8x128xf32>
    %cst_3 = arith.constant 0.000000e+00 : f32
    %3 = vector.broadcast %cst_3 : f32 to vector<8x128xf32>
    %4 = arith.maximumf %2, %3 : vector<8x128xf32>
    %5 = arith.truncf %4 : vector<8x128xf32> to vector<8x128xbf16>
    %c0_4 = arith.constant 0 : index
    %c0_5 = arith.constant 0 : index
    %6 = vector.load %arg3[%c0_4, %c0_5] : memref<128x128xbf16, #tpu.memory_space<vmem>>, vector<128x128xbf16>
    %cst_6 = arith.constant dense<0.000000e+00> : vector<8x128xf32>
    %7 = tpu.matmul %5, %6, %cst_6 {dimension_numbers = #tpu.dot_dimension_numbers<[1], [0], [0], [1], [0, 0, 1, 1], [], []>} : vector<8x128xbf16>, vector<128x128xbf16>, vector<8x128xf32> -> vector<8x128xf32>
    %cst_7 = arith.constant 0.000000e+00 : f32
    %8 = vector.broadcast %cst_7 : f32 to vector<8x128xf32>
    %9 = arith.maximumf %7, %8 : vector<8x128xf32>
    %c0_8 = arith.constant 0 : index
    %c0_9 = arith.constant 0 : index
    %10 = vector.load %arg1[%c0_8, %c0_9] : memref<8x128xbf16, #tpu.memory_space<vmem>>, vector<8x128xbf16>
    %11 = arith.extf %10 : vector<8x128xbf16> to vector<8x128xf32>
    %cst_10 = arith.constant 0.699999988 : f32
    %12 = vector.broadcast %cst_10 : f32 to vector<8x128xf32>
    %13 = arith.mulf %12, %9 : vector<8x128xf32>
    %cst_11 = arith.constant 3.000000e-01 : f32
    %14 = vector.broadcast %cst_11 : f32 to vector<8x128xf32>
    %15 = arith.mulf %14, %11 : vector<8x128xf32>
    %16 = arith.addf %13, %15 : vector<8x128xf32>
    %c0_12 = arith.constant 0 : index
    %c0_13 = arith.constant 0 : index
    %17 = vector.load %arg4[%c0_12, %c0_13] : memref<8x128xf32, #tpu.memory_space<vmem>>, vector<8x128xf32>
    tpu.vector_store %arg4[%c0_12, %c0_13], %16 {strides = array<i32>} : memref<8x128xf32, #tpu.memory_space<vmem>>, vector<8x128xf32>,
    return
  }
  func.func @transform_0(%arg0: i32) -> (i32, i32) {
    %c0_i32 = arith.constant 0 : i32
    %c0_i32_0 = arith.constant 0 : i32
    return %arg0, %c0_i32 : i32, i32
  }
  func.func @transform_1(%arg0: i32) -> (i32, i32) {
    %c0_i32 = arith.constant 0 : i32
    %c0_i32_0 = arith.constant 0 : i32
    %c0_i32_1 = arith.constant 0 : i32
    return %c0_i32, %c0_i32_0 : i32, i32
  }
  func.func @transform_2(%arg0: i32) -> (i32, i32) {
    %c0_i32 = arith.constant 0 : i32
    %c0_i32_0 = arith.constant 0 : i32
    %c0_i32_1 = arith.constant 0 : i32
    return %c0_i32, %c0_i32_0 : i32, i32
  }
  func.func @transform_3(%arg0: i32) -> (i32, i32) {
    %c0_i32 = arith.constant 0 : i32
    %c0_i32_0 = arith.constant 0 : i32
    return %arg0, %c0_i32 : i32, i32
  }
}

</mosaic_0001>

<llo_original>
// kernel: tpu_custom_call.1
$region0: #{tpu_custom_call.1}
  #allocation0 [shape = 'u32[]', space=smem, size = 0x4, offset = 0x4, fixed_abs, tag = 'smem constant byte address 0x4 - core index']
  #allocation1 [shape = 'u32[72,128]{1,0:T(1,128)}', space=vmem, size = 0x9000, scoped, tag = 'internal scratch']
  %s0 = inlined_call_operand.hbm [shape: bf16[8,128], index: 0, kind: input, shape index: {}]
  %s1 = inlined_call_operand.hbm [shape: bf16[128,128], index: 1, kind: input, shape index: {}]
  %s2 = inlined_call_operand.hbm [shape: bf16[128,128], index: 2, kind: input, shape index: {}]
  %s3 = inlined_call_operand.hbm [shape: f32[8,128], index: 3, kind: output, shape index: {}]
  %s4 = sld [smem:[#allocation0]]
  $region34: #{tpu_custom_call.1} parent=0
    _
  %s6 = ssub.s32 1, %s4
  %s7 = scalar_select 0, %s6, %s4
  $region1: #{tpu_custom_call.1} parent=0
    #allocation2 [shape = 'u8[2048]{0}', space=vmem, size = 0x800, scoped, tag = 'input window, operand 0, single buffered']
    #allocation3 [shape = 's32[1]{0}', space=sflag, size = 0x4, scoped, tag = 'scoped memory for tpu_custom_call.1']
    #allocation4 [shape = 's32[1]{0}', space=sflag, size = 0x4, scoped, tag = 'scoped memory for tpu_custom_call.1']
    #allocation5 [shape = 'u8[32768]{0}', space=vmem, size = 0x8000, scoped, tag = 'input window, operand 1, single buffered']
    #allocation6 [shape = 's32[1]{0}', space=sflag, size = 0x4, scoped, tag = 'scoped memory for tpu_custom_call.1']
    #allocation7 [shape = 'u8[32768]{0}', space=vmem, size = 0x8000, scoped, tag = 'input window, operand 2, single buffered']
    #allocation8 [shape = 'u8[4096]{0}', space=vmem, size = 0x1000, scoped, tag = 'output window, operand 0, single buffered']
    %8 = vsyncpa [#allocation3], 0
    %9 = vsyncpa [#allocation6], 0
    %10 = vsyncpa [#allocation4], 0
    // Predicated region
    $region2: #{tpu_custom_call.1} parent=1 // pred_check
      _
    $region3: #{tpu_custom_call.1} parent=1 // pred_check_branch
      %12 = sbr.rel (0) target = $region5
    $region4: #{tpu_custom_call.1} parent=1 // pred_region
      %14 = vsyncadd [#allocation3], 0
      %s16 = sshll.u32 %s0, 4
      %s17 = int_to_ptr.hbm [resolvable:$true] %s16
      %s18 = sshll.u32 [#allocation2], 4
      %s19 = int_to_ptr.vmem [resolvable:$true] %s18
      %21 = dma.hbm_to_vmem [thread:$0]  %s17, 64, %s19, [#allocation3]
    $region5: #{tpu_custom_call.1} parent=1 // pred_fallthru
      _
    // Predicated region
    $region6: #{tpu_custom_call.1} parent=1 // pred_check
      _
    $region7: #{tpu_custom_call.1} parent=1 // pred_check_branch
      %23 = sbr.rel (0) target = $region9
    $region8: #{tpu_custom_call.1} parent=1 // pred_region
      %25 = vsyncadd [#allocation6], 0
      %s26 = sshll.u32 %s1, 4
      %s27 = int_to_ptr.hbm [resolvable:$true] %s26
      %s28 = sshll.u32 [#allocation5], 4
      %s29 = int_to_ptr.vmem [resolvable:$true] %s28
      %34 = dma.hbm_to_vmem [thread:$0]  %s27, 1024, %s29, [#allocation6], 64, 64, 4
    $region9: #{tpu_custom_call.1} parent=1 // pred_fallthru
      _
    // Predicated region
    $region10: #{tpu_custom_call.1} parent=1 // pred_check
      _
    $region11: #{tpu_custom_call.1} parent=1 // pred_check_branch
      %36 = sbr.rel (0) target = $region13
    $region12: #{tpu_custom_call.1} parent=1 // pred_region
      %38 = vsyncadd [#allocation6], 0
      %s39 = sshll.u32 %s2, 4
      %s40 = int_to_ptr.hbm [resolvable:$true] %s39
      %s41 = sshll.u32 [#allocation7], 4
      %s42 = int_to_ptr.vmem [resolvable:$true] %s41
      %47 = dma.hbm_to_vmem [thread:$0]  %s40, 1024, %s42, [#allocation6], 64, 64, 4
    $region13: #{tpu_custom_call.1} parent=1 // pred_fallthru
      _
    // Predicated region
    $region14: #{tpu_custom_call.1} parent=1 // pred_check
      _
    $region15: #{tpu_custom_call.1} parent=1 // pred_check_branch
      %49 = sbr.rel (0) target = $region17
    $region16: #{tpu_custom_call.1} parent=1 // pred_region
      %51 = dma.done [#allocation3], 64
    $region17: #{tpu_custom_call.1} parent=1 // pred_fallthru
      _
    // Predicated region
    $region18: #{tpu_custom_call.1} parent=1 // pred_check
      _
    $region19: #{tpu_custom_call.1} parent=1 // pred_check_branch
      %53 = sbr.rel (0) target = $region21
    $region20: #{tpu_custom_call.1} parent=1 // pred_region
      %55 = dma.done [#allocation6], 1024
    $region21: #{tpu_custom_call.1} parent=1 // pred_fallthru
      _
    // Predicated region
    $region22: #{tpu_custom_call.1} parent=1 // pred_check
      _
    $region23: #{tpu_custom_call.1} parent=1 // pred_check_branch
      %57 = sbr.rel (0) target = $region25
    $region24: #{tpu_custom_call.1} parent=1 // pred_region
      %59 = dma.done [#allocation6], 1024
    $region25: #{tpu_custom_call.1} parent=1 // pred_fallthru
      _
    %v60 = vld [vmem:[#allocation2] sm:$0xf]
    %v61 = vld [vmem:[#allocation5] sm:$0xf]
    %v62 = vld [vmem:[#allocation5 + $0x4] sm:$0xf]
    %v63 = vld [vmem:[#allocation5 + $0x8] sm:$0xf]
    %v64 = vld [vmem:[#allocation5 + $0xc] sm:$0xf]
    %v65 = vld [vmem:[#allocation5 + $0x10] sm:$0xf]
    %v66 = vld [vmem:[#allocation5 + $0x14] sm:$0xf]
    %v67 = vld [vmem:[#allocation5 + $0x18] sm:$0xf]
    %v68 = vld [vmem:[#allocation5 + $0x1c] sm:$0xf]
    %v69 = vld [vmem:[#allocation5 + $0x20] sm:$0xf]
    %v70 = vld [vmem:[#allocation5 + $0x24] sm:$0xf]
    %v71 = vld [vmem:[#allocation5 + $0x28] sm:$0xf]
    %v72 = vld [vmem:[#allocation5 + $0x2c] sm:$0xf]
    %v73 = vld [vmem:[#allocation5 + $0x30] sm:$0xf]
    %v74 = vld [vmem:[#allocation5 + $0x34] sm:$0xf]
    %v75 = vld [vmem:[#allocation5 + $0x38] sm:$0xf]
    %v76 = vld [vmem:[#allocation5 + $0x3c] sm:$0xf]
    %v93 = vunpack.c.l.b16 %v61
    %v94 = vunpack.c.l.b16 %v62
    %v95 = vunpack.c.l.b16 %v63
    %v96 = vunpack.c.l.b16 %v64
    %v97 = vunpack.c.l.b16 %v65
    %v98 = vunpack.c.l.b16 %v66
    %v99 = vunpack.c.l.b16 %v67
    %v100 = vunpack.c.l.b16 %v68
    %v101 = vunpack.c.l.b16 %v69
    %v102 = vunpack.c.l.b16 %v70
    %v103 = vunpack.c.l.b16 %v71
    %v104 = vunpack.c.l.b16 %v72
    %v105 = vunpack.c.l.b16 %v73
    %v106 = vunpack.c.l.b16 %v74
    %v107 = vunpack.c.l.b16 %v75
    %v108 = vunpack.c.l.b16 %v76
    %v109 = vpack.c.b16 %v94, %v93
    %v110 = vpack.c.b16 %v96, %v95
    %v111 = vpack.c.b16 %v98, %v97
    %v112 = vpack.c.b16 %v100, %v99
    %v113 = vpack.c.b16 %v102, %v101
    %v114 = vpack.c.b16 %v104, %v103
    %v115 = vpack.c.b16 %v106, %v105
    %v116 = vpack.c.b16 %v108, %v107
    %125 = vmatpush.bf16.msra.mxu0 %v116
    %126 = vmatpush.bf16.msra.mxu0 %v115
    %127 = vmatpush.bf16.msra.mxu0 %v114
    %128 = vmatpush.bf16.msra.mxu0 %v113
    %129 = vmatpush.bf16.msra.mxu0 %v112
    %130 = vmatpush.bf16.msra.mxu0 %v111
    %131 = vmatpush.bf16.msra.mxu0 %v110
    %132 = vmatpush.bf16.msra.mxu0 %v109
    %133 = vmatmul.bf16.gmra.mxu0 %v60
    %v134 = vpop.f32.mrf.mxu0
    %v135 = vadd.f32 0.0, %v134
    %v136 = vpop.f32.mrf.mxu0
    %137 = vdwg.mxu0
    %v138 = vmax.f32 %v135, 0.0
    %v139 = vpack.c.bf16 %v138, %v138
    %v140 = vld [vmem:[#allocation7] sm:$0xf]
    %v141 = vld [vmem:[#allocation7 + $0x4] sm:$0xf]
    %v142 = vld [vmem:[#allocation7 + $0x8] sm:$0xf]
    %v143 = vld [vmem:[#allocation7 + $0xc] sm:$0xf]
    %v144 = vld [vmem:[#allocation7 + $0x10] sm:$0xf]
    %v145 = vld [vmem:[#allocation7 + $0x14] sm:$0xf]
    %v146 = vld [vmem:[#allocation7 + $0x18] sm:$0xf]
    %v147 = vld [vmem:[#allocation7 + $0x1c] sm:$0xf]
    %v148 = vld [vmem:[#allocation7 + $0x20] sm:$0xf]
    %v149 = vld [vmem:[#allocation7 + $0x24] sm:$0xf]
    %v150 = vld [vmem:[#allocation7 + $0x28] sm:$0xf]
    %v151 = vld [vmem:[#allocation7 + $0x2c] sm:$0xf]
    %v152 = vld [vmem:[#allocation7 + $0x30] sm:$0xf]
    %v153 = vld [vmem:[#allocation7 + $0x34] sm:$0xf]
    %v154 = vld [vmem:[#allocation7 + $0x38] sm:$0xf]
    %v155 = vld [vmem:[#allocation7 + $0x3c] sm:$0xf]
    %v172 = vunpack.c.l.b16 %v140
    %v173 = vunpack.c.l.b16 %v141
    %v174 = vunpack.c.l.b16 %v142
    %v175 = vunpack.c.l.b16 %v143
    %v176 = vunpack.c.l.b16 %v144
    %v177 = vunpack.c.l.b16 %v145
    %v178 = vunpack.c.l.b16 %v146
    %v179 = vunpack.c.l.b16 %v147
    %v180 = vunpack.c.l.b16 %v148
    %v181 = vunpack.c.l.b16 %v149
    %v182 = vunpack.c.l.b16 %v150
    %v183 = vunpack.c.l.b16 %v151
    %v184 = vunpack.c.l.b16 %v152
    %v185 = vunpack.c.l.b16 %v153
    %v186 = vunpack.c.l.b16 %v154
    %v187 = vunpack.c.l.b16 %v155
    %v188 = vpack.c.b16 %v173, %v172
    %v189 = vpack.c.b16 %v175, %v174
    %v190 = vpack.c.b16 %v177, %v176
    %v191 = vpack.c.b16 %v179, %v178
    %v192 = vpack.c.b16 %v181, %v180
    %v193 = vpack.c.b16 %v183, %v182
    %v194 = vpack.c.b16 %v185, %v184
    %v195 = vpack.c.b16 %v187, %v186
    %204 = vmatpush.bf16.msra.mxu0 %v195
    %205 = vmatpush.bf16.msra.mxu0 %v194
    %206 = vmatpush.bf16.msra.mxu0 %v193
    %207 = vmatpush.bf16.msra.mxu0 %v192
    %208 = vmatpush.bf16.msra.mxu0 %v191
    %209 = vmatpush.bf16.msra.mxu0 %v190
    %210 = vmatpush.bf16.msra.mxu0 %v189
    %211 = vmatpush.bf16.msra.mxu0 %v188
    %212 = vmatmul.bf16.gmra.mxu0 %v139
    %v213 = vpop.f32.mrf.mxu0
    %v214 = vadd.f32 0.0, %v213
    %v215 = vpop.f32.mrf.mxu0
    %216 = vdwg.mxu0
    %v217 = vmax.f32 %v214, 0.0
    %v218 = vunpack.c.l.bf16 %v60
    %v219 = vmul.f32 %v217, 0.7
    %v220 = vmul.f32 %v218, 0.3
    %v221 = vadd.f32 %v219, %v220
    %222 = vst [vmem:[#allocation8] sm:$0xff] %v221
    // Predicated region
    $region26: #{tpu_custom_call.1} parent=1 // pred_check
      _
    $region27: #{tpu_custom_call.1} parent=1 // pred_check_branch
      %224 = sbr.rel (0) target = $region29
    $region28: #{tpu_custom_call.1} parent=1 // pred_region
      %226 = vsyncadd [#allocation4], 0
      %s228 = sshll.u32 [#allocation8], 4
      %s229 = int_to_ptr.vmem [resolvable:$true] %s228
      %s230 = sshll.u32 %s3, 4
      %s231 = int_to_ptr.hbm [resolvable:$true] %s230
      %233 = dma.vmem_to_hbm [thread:$0]  %s229, 128, %s231, [#allocation4]
    $region29: #{tpu_custom_call.1} parent=1 // pred_fallthru
      _
    // Predicated region
    $region30: #{tpu_custom_call.1} parent=1 // pred_check
      _
    $region31: #{tpu_custom_call.1} parent=1 // pred_check_branch
      %235 = sbr.rel (0) target = $region33
    $region32: #{tpu_custom_call.1} parent=1 // pred_region
      %237 = dma.done [#allocation4], 128
    $region33: #{tpu_custom_call.1} parent=1 // pred_fallthru
      _
    %238 = vsyncpa [#allocation3], 1
    %239 = vsyncpa [#allocation6], 1
    %240 = vsyncpa [#allocation4], 1

</llo_original>
